<compile_context>
chip_gen: v5e
topology: v5e:2x2
jax: 0.10.0
libtpu: 0.0.40
codegen_flags: <defaults>
</compile_context>

<pallas_src>
import jax
import jax.numpy as jnp
from jax.experimental import pallas as pl
from jax.experimental.pallas import tpu as pltpu


def _mask_net_kernel(x_ref, wn_ref, b_ref, o_ref):
    # o = (-W) * (x - b); wn/b are (1, lanes) and broadcast over the row axis.
    o_ref[...] = wn_ref[...] * (x_ref[...] - b_ref[...])


def linear_mask_net_forward(x, W, b, *, max_block_rows=2048,
                            target_tile_bytes=1 << 20,
                            vmem_limit_bytes=32 * 1024 * 1024):
    """Pallas forward pass of LinearMaskNet: -W * (x - b).

    Args:
      x: (batch, input_dim) float
      W: (1, input_dim) float
      b: (1, input_dim) float
    Returns:
      (batch, input_dim), same dtype as x.
    """
    batch, input_dim = x.shape
    assert W.shape == (1, input_dim) and b.shape == (1, input_dim)
    dtype = x.dtype

    w_neg = (-W).astype(dtype)
    b = b.astype(dtype)

    # ---- Layout plumbing: present a 128-lane-dense last dimension. ----------
    if input_dim % 128 == 0:
        # Already lane-dense.
        pack = 1
        lanes = input_dim
        rows = batch
        x2, w2, b2 = x, w_neg, b
    elif 128 % input_dim == 0:
        # Fold `pack` logical rows into one 128-lane row; W/b repeat every
        # input_dim lanes, so tiling them keeps the math identical.
        pack = 128 // input_dim
        rows = pl.cdiv(batch, pack)
        pad_rows = rows * pack - batch
        xp = jnp.pad(x, ((0, pad_rows), (0, 0))) if pad_rows else x
        lanes = 128
        x2 = xp.reshape(rows, lanes)
        w2 = jnp.tile(w_neg, (1, pack))
        b2 = jnp.tile(b, (1, pack))
    else:
        # General fallback: zero-pad the lane axis up to a multiple of 128.
        pack = 1
        lanes = pl.cdiv(input_dim, 128) * 128
        pad_l = lanes - input_dim
        x2 = jnp.pad(x, ((0, 0), (0, pad_l)))
        w2 = jnp.pad(w_neg, ((0, 0), (0, pad_l)))
        b2 = jnp.pad(b, ((0, 0), (0, pad_l)))
        rows = batch

    # ---- Tile the row (sublane) axis; pad so the grid covers it evenly. -----
    itemsize = jnp.dtype(dtype).itemsize
    # Aim for ~target_tile_bytes per x tile, multiple of 8 sublanes, capped.
    tb = max(8, min(max_block_rows, target_tile_bytes // (lanes * itemsize)))
    tb = (tb // 8) * 8
    tb = min(tb, ((rows + 7) // 8) * 8)           # never bigger than the data
    padded_rows = pl.cdiv(rows, tb) * tb
    if padded_rows != rows:
        x2 = jnp.pad(x2, ((0, padded_rows - rows), (0, 0)))
    grid = (padded_rows // tb,)

    out2 = pl.pallas_call(
        _mask_net_kernel,
        out_shape=jax.ShapeDtypeStruct((padded_rows, lanes), dtype),
        grid_spec=pltpu.PrefetchScalarGridSpec(
            num_scalar_prefetch=0,
            grid=grid,
            in_specs=[
                pl.BlockSpec((tb, lanes), lambda i: (i, 0)),   # x tile (pipelined)
                pl.BlockSpec((1, lanes), lambda i: (0, 0)),    # -W (resident)
                pl.BlockSpec((1, lanes), lambda i: (0, 0)),    # b  (resident)
            ],
            out_specs=pl.BlockSpec((tb, lanes), lambda i: (i, 0)),
        ),
        compiler_params=pltpu.CompilerParams(
            dimension_semantics=("parallel",),
            vmem_limit_bytes=vmem_limit_bytes,
        ),
    )(x2, w2, b2)

    # ---- Undo the layout plumbing. -------------------------------------------
    out2 = out2[:rows]
    if pack > 1:
        out = out2.reshape(rows * pack, input_dim)[:batch]
    elif lanes != input_dim:
        out = out2[:, :input_dim]
    else:
        out = out2
    return out


if __name__ == "__main__":
    key = jax.random.PRNGKey(0)

    # Primary config (matches the module's typical use): input_dim=32.
    # Note: the latent_connection branch in the reference __init__ is dead code
    # (input_dim always wins), so only input_dim matters here.
    batch, input_dim = 8, 32
    kx, kw, kb, k2, k3 = jax.random.split(key, 5)
    x = jax.random.normal(kx, (batch, input_dim), dtype=jnp.float32)
    # PyTorch initializes W/b to zeros; use non-zero values so the math is
    # exercised non-trivially.
    W = jax.random.normal(kw, (1, input_dim), dtype=jnp.float32) * 0.1
    b = jax.random.normal(kb, (1, input_dim), dtype=jnp.float32) * 0.1

    out = jax.block_until_ready(linear_mask_net_forward(x, W, b))
    ref = -W * (x - b)
    assert out.shape == (batch, input_dim)
    assert jnp.allclose(out, ref, atol=1e-6), "mismatch vs reference (packed path)"

    # Check the lane-padding fallback path (input_dim neither divides nor is a
    # multiple of 128).
    batch2, input_dim2 = 10, 48
    k2a, k2b, k2c = jax.random.split(k2, 3)
    x2 = jax.random.normal(k2a, (batch2, input_dim2), dtype=jnp.float32)
    W2 = jax.random.normal(k2b, (1, input_dim2), dtype=jnp.float32) * 0.1
    b2 = jax.random.normal(k2c, (1, input_dim2), dtype=jnp.float32) * 0.1
    out2 = jax.block_until_ready(linear_mask_net_forward(x2, W2, b2))
    ref2 = -W2 * (x2 - b2)
    assert out2.shape == (batch2, input_dim2)
    assert jnp.allclose(out2, ref2, atol=1e-6), "mismatch vs reference (padded path)"

    # Check the already-lane-dense path (input_dim multiple of 128).
    batch3, input_dim3 = 4, 256
    k3a, k3b, k3c = jax.random.split(k3, 3)
    x3 = jax.random.normal(k3a, (batch3, input_dim3), dtype=jnp.float32)
    W3 = jax.random.normal(k3b, (1, input_dim3), dtype=jnp.float32) * 0.1
    b3 = jax.random.normal(k3c, (1, input_dim3), dtype=jnp.float32) * 0.1
    out3 = jax.block_until_ready(linear_mask_net_forward(x3, W3, b3))
    ref3 = -W3 * (x3 - b3)
    assert out3.shape == (batch3, input_dim3)
    assert jnp.allclose(out3, ref3, atol=1e-6), "mismatch vs reference (dense path)"

    print("KERNEL_OK")
</pallas_src>

<mosaic_0001>
module attributes {stable_mosaic.version = 11 : i64} {
  func.func @_mask_net_kernel(%arg0: i32, %arg1: memref<8x128xf32, #tpu.memory_space<vmem>>, %arg2: memref<1x128xf32, #tpu.memory_space<vmem>>, %arg3: memref<1x128xf32, #tpu.memory_space<vmem>>, %arg4: memref<8x128xf32, #tpu.memory_space<vmem>>) attributes {dimension_semantics = [#tpu.dimension_semantics<parallel>], iteration_bounds = array<i64: 1>, scalar_prefetch = 0 : i64, scratch_operands = 0 : i64, tpu.core_type = #tpu.core_type<tc>, window_params = [{transform_indices = @transform_0, window_bounds = array<i64: 8, 128>}, {pipeline_mode = #tpu.pipeline_mode<synchronous>, transform_indices = @transform_1, window_bounds = array<i64: 1, 128>}, {pipeline_mode = #tpu.pipeline_mode<synchronous>, transform_indices = @transform_2, window_bounds = array<i64: 1, 128>}, {transform_indices = @transform_3, window_bounds = array<i64: 8, 128>}]} {
    %c0 = arith.constant 0 : index
    %c0_0 = arith.constant 0 : index
    %0 = vector.load %arg2[%c0, %c0_0] : memref<1x128xf32, #tpu.memory_space<vmem>>, vector<1x128xf32>
    %c0_1 = arith.constant 0 : index
    %c0_2 = arith.constant 0 : index
    %1 = vector.load %arg1[%c0_1, %c0_2] : memref<8x128xf32, #tpu.memory_space<vmem>>, vector<8x128xf32>
    %c0_3 = arith.constant 0 : index
    %c0_4 = arith.constant 0 : index
    %2 = vector.load %arg3[%c0_3, %c0_4] : memref<1x128xf32, #tpu.memory_space<vmem>>, vector<1x128xf32>
    %3 = vector.broadcast %2 : vector<1x128xf32> to vector<8x128xf32>
    %4 = arith.subf %1, %3 : vector<8x128xf32>
    %5 = vector.broadcast %0 : vector<1x128xf32> to vector<8x128xf32>
    %6 = arith.mulf %5, %4 : vector<8x128xf32>
    %c0_5 = arith.constant 0 : index
    %c0_6 = arith.constant 0 : index
    %7 = vector.load %arg4[%c0_5, %c0_6] : memref<8x128xf32, #tpu.memory_space<vmem>>, vector<8x128xf32>
    tpu.vector_store %arg4[%c0_5, %c0_6], %6 {strides = array<i32>} : memref<8x128xf32, #tpu.memory_space<vmem>>, vector<8x128xf32>,
    return
  }
  func.func @transform_0(%arg0: i32) -> (i32, i32) {
    %c0_i32 = arith.constant 0 : i32
    %c0_i32_0 = arith.constant 0 : i32
    return %arg0, %c0_i32 : i32, i32
  }
  func.func @transform_1(%arg0: i32) -> (i32, i32) {
    %c0_i32 = arith.constant 0 : i32
    %c0_i32_0 = arith.constant 0 : i32
    %c0_i32_1 = arith.constant 0 : i32
    return %c0_i32, %c0_i32_0 : i32, i32
  }
  func.func @transform_2(%arg0: i32) -> (i32, i32) {
    %c0_i32 = arith.constant 0 : i32
    %c0_i32_0 = arith.constant 0 : i32
    %c0_i32_1 = arith.constant 0 : i32
    return %c0_i32, %c0_i32_0 : i32, i32
  }
  func.func @transform_3(%arg0: i32) -> (i32, i32) {
    %c0_i32 = arith.constant 0 : i32
    %c0_i32_0 = arith.constant 0 : i32
    return %arg0, %c0_i32 : i32, i32
  }
}

</mosaic_0001>

<llo_original>
// kernel: tpu_custom_call.1
$region0: #{tpu_custom_call.1}
  #allocation0 [shape = 'u32[]', space=smem, size = 0x4, offset = 0x4, fixed_abs, tag = 'smem constant byte address 0x4 - core index']
  #allocation1 [shape = 'u32[72,128]{1,0:T(1,128)}', space=vmem, size = 0x9000, scoped, tag = 'internal scratch']
  %s0 = inlined_call_operand.hbm [shape: f32[8,128], index: 0, kind: input, shape index: {}]
  %s1 = inlined_call_operand.hbm [shape: f32[1,128], index: 1, kind: input, shape index: {}]
  %s2 = inlined_call_operand.vmem [shape: f32[1,128], index: 2, kind: input, shape index: {}]
  %s3 = inlined_call_operand.hbm [shape: f32[8,128], index: 3, kind: output, shape index: {}]
  %s4 = sld [smem:[#allocation0]]
  $region30: #{tpu_custom_call.1} parent=0
    _
  %s6 = ssub.s32 1, %s4
  %s7 = scalar_select 0, %s6, %s4
  $region1: #{tpu_custom_call.1} parent=0
    #allocation2 [shape = 'u8[4096]{0}', space=vmem, size = 0x1000, scoped, tag = 'input window, operand 0, single buffered']
    #allocation3 [shape = 's32[1]{0}', space=sflag, size = 0x4, scoped, tag = 'scoped memory for tpu_custom_call.1']
    #allocation4 [shape = 's32[1]{0}', space=sflag, size = 0x4, scoped, tag = 'scoped memory for tpu_custom_call.1']
    #allocation5 [shape = 'u8[512]{0}', space=vmem, size = 0x400, scoped, tag = 'input window, operand 1, single buffered']
    #allocation6 [shape = 's32[1]{0}', space=sflag, size = 0x4, scoped, tag = 'scoped memory for tpu_custom_call.1']
    #allocation7 [shape = 'u8[4096]{0}', space=vmem, size = 0x1000, scoped, tag = 'output window, operand 0, single buffered']
    %8 = vsyncpa [#allocation3], 0
    %9 = vsyncpa [#allocation6], 0
    %10 = vsyncpa [#allocation4], 0
    // Predicated region
    $region2: #{tpu_custom_call.1} parent=1 // pred_check
      _
    $region3: #{tpu_custom_call.1} parent=1 // pred_check_branch
      %12 = sbr.rel (0) target = $region5
    $region4: #{tpu_custom_call.1} parent=1 // pred_region
      %14 = vsyncadd [#allocation3], 0
      %s16 = sshll.u32 %s0, 4
      %s17 = int_to_ptr.hbm [resolvable:$true] %s16
      %s18 = sshll.u32 [#allocation2], 4
      %s19 = int_to_ptr.vmem [resolvable:$true] %s18
      %21 = dma.hbm_to_vmem [thread:$0]  %s17, 128, %s19, [#allocation3]
    $region5: #{tpu_custom_call.1} parent=1 // pred_fallthru
      _
    // Predicated region
    $region6: #{tpu_custom_call.1} parent=1 // pred_check
      _
    $region7: #{tpu_custom_call.1} parent=1 // pred_check_branch
      %23 = sbr.rel (0) target = $region9
    $region8: #{tpu_custom_call.1} parent=1 // pred_region
      %25 = vsyncadd [#allocation6], 0
      %s27 = sshll.u32 %s1, 4
      %s28 = int_to_ptr.hbm [resolvable:$true] %s27
      %s29 = sshll.u32 [#allocation5], 4
      %s30 = int_to_ptr.vmem [resolvable:$true] %s29
      %32 = dma.hbm_to_vmem [thread:$0]  %s28, 16, %s30, [#allocation6]
    $region9: #{tpu_custom_call.1} parent=1 // pred_fallthru
      _
    // Predicated region
    $region10: #{tpu_custom_call.1} parent=1 // pred_check
      _
    $region11: #{tpu_custom_call.1} parent=1 // pred_check_branch
      %34 = sbr.rel (0) target = $region13
    $region12: #{tpu_custom_call.1} parent=1 // pred_region
      _
    $region13: #{tpu_custom_call.1} parent=1 // pred_fallthru
      _
    // Predicated region
    $region14: #{tpu_custom_call.1} parent=1 // pred_check
      _
    $region15: #{tpu_custom_call.1} parent=1 // pred_check_branch
      %36 = sbr.rel (0) target = $region17
    $region16: #{tpu_custom_call.1} parent=1 // pred_region
      %38 = dma.done [#allocation3], 128
    $region17: #{tpu_custom_call.1} parent=1 // pred_fallthru
      _
    // Predicated region
    $region18: #{tpu_custom_call.1} parent=1 // pred_check
      _
    $region19: #{tpu_custom_call.1} parent=1 // pred_check_branch
      %40 = sbr.rel (0) target = $region21
    $region20: #{tpu_custom_call.1} parent=1 // pred_region
      %42 = dma.done [#allocation6], 16
    $region21: #{tpu_custom_call.1} parent=1 // pred_fallthru
      _
    %v43 = vld [vmem:[#allocation5] sm:$0x1]
    %v44 = vld [vmem:[#allocation2] sm:$0xff]
    %v45 = vld [vmem:[%s2] sm:$0x1]
    %v47 = vperm.slane %v45, 0
    %v49 = vsub.f32 %v44, %v47
    %v51 = vperm.slane %v43, 0
    %v53 = vmul.f32 %v51, %v49
    %54 = vst [vmem:[#allocation7] sm:$0xff] %v53
    // Predicated region
    $region22: #{tpu_custom_call.1} parent=1 // pred_check
      _
    $region23: #{tpu_custom_call.1} parent=1 // pred_check_branch
      %56 = sbr.rel (0) target = $region25
    $region24: #{tpu_custom_call.1} parent=1 // pred_region
      %58 = vsyncadd [#allocation4], 0
      %s60 = sshll.u32 [#allocation7], 4
      %s61 = int_to_ptr.vmem [resolvable:$true] %s60
      %s62 = sshll.u32 %s3, 4
      %s63 = int_to_ptr.hbm [resolvable:$true] %s62
      %65 = dma.vmem_to_hbm [thread:$0]  %s61, 128, %s63, [#allocation4]
    $region25: #{tpu_custom_call.1} parent=1 // pred_fallthru
      _
    // Predicated region
    $region26: #{tpu_custom_call.1} parent=1 // pred_check
      _
    $region27: #{tpu_custom_call.1} parent=1 // pred_check_branch
      %67 = sbr.rel (0) target = $region29
    $region28: #{tpu_custom_call.1} parent=1 // pred_region
      %69 = dma.done [#allocation4], 128
    $region29: #{tpu_custom_call.1} parent=1 // pred_fallthru
      _
    %70 = vsyncpa [#allocation3], 1
    %71 = vsyncpa [#allocation6], 1
    %72 = vsyncpa [#allocation4], 1

</llo_original>
